<compile_context>
chip_gen: v5e
topology: v5e:2x2
jax: 0.10.0
libtpu: 0.0.40
codegen_flags: <defaults>
</compile_context>

<pallas_src>
import functools

import jax
import jax.numpy as jnp
from jax.experimental import pallas as pl
from jax.experimental.pallas import tpu as pltpu


def _round_up(x, m):
    return ((x + m - 1) // m) * m


def _categorical_logp_kernel(x_ref, w_ref, b_ref, out_ref):
    x = x_ref[...]        # (tb, K)  batch tile of activations
    w = w_ref[...]        # (K, N)   weight, pre-transposed in the wrapper
    b = b_ref[...]        # (1, N)   bias

    # nn.Linear: x @ W.T + b (W already transposed -> plain MXU contraction, f32 accumulate).
    raw = jnp.dot(x, w, preferred_element_type=jnp.float32) + b          # (tb, N)

    # log-softmax along the action axis (max-shifted, single exp pass).
    m = jnp.max(raw, axis=-1, keepdims=True)
    z = raw - m
    s = jnp.sum(jnp.exp(z), axis=-1, keepdims=True)
    logp = z - jnp.log(s)                                                # (tb, N)

    # Lane-dense store: batch on lanes (tb is a multiple of 128), actions on sublanes.
    # The (tb, N) -> (N, tb) transpose is an XLU op (free slot on a store-bound kernel).
    out_ref[...] = logp.T                                                # (N, tb)


@functools.partial(jax.jit, static_argnames=("block_b",))
def categorical_log_probs_t(x, weight, bias, *, block_b=2048):
    """Normalized log-probs of Categorical(logits = x @ W.T + b), batch-on-lanes: (N, B)."""
    B, K = x.shape
    N = weight.shape[0]

    x = jnp.asarray(x, jnp.float32)
    w_kn = jnp.asarray(weight, jnp.float32).T        # (K, N): tiny static param, transposed once
    b2d = jnp.asarray(bias, jnp.float32).reshape(1, N)

    # Batch tile: multiple of 128 (lane-dense output).  Aim for >= 2 grid steps so the
    # "parallel" batch axis can shard across both TensorCores on v7x, capped by block_b.
    tb = min(_round_up(pl.cdiv(B, 2), 128), _round_up(block_b, 128))
    grid = (pl.cdiv(B, tb),)        # ragged last tile: OOB reads garbage rows, OOB writes dropped

    # VMEM per step (double buffered): ~2*(tb*K + N*tb)*4 + K*N*4 ≈ 0.77 MB at tb=2048 —
    # comfortably under the default scoped limit on v5e/v6e/v7x, so no vmem_limit_bytes needed.
    return pl.pallas_call(
        _categorical_logp_kernel,
        out_shape=jax.ShapeDtypeStruct((N, B), jnp.float32),
        grid=grid,
        in_specs=[
            pl.BlockSpec((tb, K), lambda i: (i, 0)),   # batch-tiled activations
            pl.BlockSpec((K, N), lambda i: (0, 0)),    # weight resident in VMEM across grid steps
            pl.BlockSpec((1, N), lambda i: (0, 0)),    # bias resident in VMEM across grid steps
        ],
        out_specs=pl.BlockSpec((N, tb), lambda i: (0, i)),
        compiler_params=pltpu.CompilerParams(
            dimension_semantics=("parallel",),         # independent batch tiles (megacore on v7x)
        ),
    )(x, w_kn, b2d)


class FixedCategorical:
    """JAX analogue of the torch FixedCategorical, built on the kernel's (N, B) log-probs.

    All methods consume the lane-dense (N, B) layout directly; `.logits` / `.probs`
    transpose lazily only when a (B, N) view is explicitly requested.
    """

    def __init__(self, log_probs_t):
        self._logp_t = log_probs_t                 # (N, B), normalized log-probs

    @property
    def logits(self):                              # (B, N) normalized logits == log-probs
        return self._logp_t.T

    @property
    def probs(self):                               # (B, N)
        return jnp.exp(self._logp_t).T

    def sample(self, key):                         # (B, 1)
        return jax.random.categorical(key, self._logp_t, axis=0)[:, None]

    def log_probs(self, actions):                  # actions (B, 1) -> (B, 1)
        a = actions.reshape(1, -1).astype(jnp.int32)
        return jnp.take_along_axis(self._logp_t, a, axis=0).reshape(-1, 1)

    def mode(self):                                # (B, 1)
        return jnp.argmax(self._logp_t, axis=0)[:, None]

    def entropy(self):                             # (B,)
        return -jnp.sum(jnp.exp(self._logp_t) * self._logp_t, axis=0)


def categorical_forward(x, weight, bias, *, block_b=2048):
    """Forward of the Categorical module: FixedCategorical over logits = x @ W.T + b."""
    # TODO(synk): sample()/log_probs()/mode() are dispatch-time distribution methods;
    # they run as plain JAX ops on the kernel's log-probs, not inside the Pallas kernel.
    return FixedCategorical(categorical_log_probs_t(x, weight, bias, block_b=block_b))


def orthogonal_init(key, shape, gain):
    """Mimics nn.init.orthogonal_ (QR of a gaussian, sign-corrected), scaled by gain."""
    rows, cols = shape
    a = jax.random.normal(key, shape, dtype=jnp.float32)
    flat = a.T if rows < cols else a
    q, r = jnp.linalg.qr(flat)
    d = jnp.sign(jnp.diag(r))
    q = q * d[None, :]
    if rows < cols:
        q = q.T
    return gain * q


if __name__ == "__main__":
    num_inputs = 32    # hidden size feeding the head
    num_outputs = 16   # number of discrete actions
    batch = 500        # NOT a multiple of the 256-row tile: exercises the ragged last block (no jnp.pad)

    key = jax.random.PRNGKey(0)
    kx, kw = jax.random.split(key)

    # Deterministic parameter init matching the module's init_ (orthogonal gain=0.01, bias=0).
    weight = orthogonal_init(kw, (num_outputs, num_inputs), gain=0.01)   # (N, K) like nn.Linear
    bias = jnp.zeros((num_outputs,), dtype=jnp.float32)

    x = jax.random.normal(kx, (batch, num_inputs), dtype=jnp.float32)

    dist = categorical_forward(x, weight, bias, block_b=256)   # tb=256 -> 2 grid steps, last one ragged
    logp = jax.block_until_ready(dist.logits)                  # (B, N)

    # Sanity checks against a pure-JAX reference.
    ref_raw = x @ weight.T + bias[None, :]
    ref_logp = jax.nn.log_softmax(ref_raw, axis=-1)
    ref_probs = jax.nn.softmax(ref_raw, axis=-1)

    assert logp.shape == (batch, num_outputs)
    assert jnp.allclose(logp, ref_logp, atol=1e-5)
    assert jnp.allclose(dist.probs, ref_probs, atol=1e-5)
    assert jnp.allclose(jnp.sum(dist.probs, axis=-1), 1.0, atol=1e-5)

    actions = dist.mode()                                      # (B, 1)
    assert actions.shape == (batch, 1)
    lp_act = dist.log_probs(actions)                           # (B, 1)
    ref_lp_act = jnp.take_along_axis(ref_logp, actions, axis=1)
    assert lp_act.shape == (batch, 1)
    assert jnp.allclose(lp_act, ref_lp_act, atol=1e-5)

    samp = dist.sample(jax.random.PRNGKey(1))                  # (B, 1)
    assert samp.shape == (batch, 1)
    assert bool(jnp.all((samp >= 0) & (samp < num_outputs)))

    print("KERNEL_OK")
</pallas_src>

<mosaic_0001>
module attributes {stable_mosaic.version = 11 : i64} {
  func.func @_categorical_logp_kernel(%arg0: i32, %arg1: memref<256x32xf32, #tpu.memory_space<vmem>>, %arg2: memref<32x16xf32, #tpu.memory_space<vmem>>, %arg3: memref<1x16xf32, #tpu.memory_space<vmem>>, %arg4: memref<16x256xf32, #tpu.memory_space<vmem>>) attributes {dimension_semantics = [#tpu.dimension_semantics<parallel>], iteration_bounds = array<i64: 2>, scalar_prefetch = 0 : i64, scratch_operands = 0 : i64, tpu.core_type = #tpu.core_type<tc>, window_params = [{transform_indices = @transform_0, window_bounds = array<i64: 256, 32>}, {pipeline_mode = #tpu.pipeline_mode<synchronous>, transform_indices = @transform_1, window_bounds = array<i64: 32, 16>}, {pipeline_mode = #tpu.pipeline_mode<synchronous>, transform_indices = @transform_2, window_bounds = array<i64: 1, 16>}, {transform_indices = @transform_3, window_bounds = array<i64: 16, 256>}]} {
    %c0 = arith.constant 0 : index
    %c0_0 = arith.constant 0 : index
    %0 = vector.load %arg1[%c0, %c0_0] : memref<256x32xf32, #tpu.memory_space<vmem>>, vector<256x32xf32>
    %c0_1 = arith.constant 0 : index
    %c0_2 = arith.constant 0 : index
    %1 = vector.load %arg2[%c0_1, %c0_2] : memref<32x16xf32, #tpu.memory_space<vmem>>, vector<32x16xf32>
    %c0_3 = arith.constant 0 : index
    %c0_4 = arith.constant 0 : index
    %2 = vector.load %arg3[%c0_3, %c0_4] : memref<1x16xf32, #tpu.memory_space<vmem>>, vector<1x16xf32>
    %cst = arith.constant dense<0.000000e+00> : vector<256x16xf32>
    %3 = tpu.matmul %0, %1, %cst {dimension_numbers = #tpu.dot_dimension_numbers<[1], [0], [0], [1], [0, 0, 1, 1], [], []>} : vector<256x32xf32>, vector<32x16xf32>, vector<256x16xf32> -> vector<256x16xf32>
    %4 = vector.broadcast %2 : vector<1x16xf32> to vector<256x16xf32>
    %5 = arith.addf %3, %4 : vector<256x16xf32>
    %cst_5 = arith.constant dense<0xFF800000> : vector<256xf32>
    %6 = vector.multi_reduction <maximumf>, %5, %cst_5 [1] : vector<256x16xf32> to vector<256xf32>
    %7 = vector.shape_cast %6 : vector<256xf32> to vector<256x1xf32>
    %8 = vector.broadcast %7 : vector<256x1xf32> to vector<256x16xf32>
    %9 = arith.subf %5, %8 : vector<256x16xf32>
    %10 = math.exp %9 : vector<256x16xf32>
    %cst_6 = arith.constant dense<0.000000e+00> : vector<256xf32>
    %11 = vector.multi_reduction <add>, %10, %cst_6 [1] : vector<256x16xf32> to vector<256xf32>
    %12 = vector.shape_cast %11 : vector<256xf32> to vector<256x1xf32>
    %13 = math.log %12 : vector<256x1xf32>
    %14 = vector.broadcast %13 : vector<256x1xf32> to vector<256x16xf32>
    %15 = arith.subf %9, %14 : vector<256x16xf32>
    %16 = tpu.transpose %15, [1, 0] : vector<256x16xf32> -> vector<16x256xf32>
    %c0_7 = arith.constant 0 : index
    %c0_8 = arith.constant 0 : index
    %17 = vector.load %arg4[%c0_7, %c0_8] : memref<16x256xf32, #tpu.memory_space<vmem>>, vector<16x256xf32>
    tpu.vector_store %arg4[%c0_7, %c0_8], %16 {strides = array<i32>} : memref<16x256xf32, #tpu.memory_space<vmem>>, vector<16x256xf32>,
    return
  }
  func.func @transform_0(%arg0: i32) -> (i32, i32) {
    %c0_i32 = arith.constant 0 : i32
    %c0_i32_0 = arith.constant 0 : i32
    return %arg0, %c0_i32 : i32, i32
  }
  func.func @transform_1(%arg0: i32) -> (i32, i32) {
    %c0_i32 = arith.constant 0 : i32
    %c0_i32_0 = arith.constant 0 : i32
    %c0_i32_1 = arith.constant 0 : i32
    return %c0_i32, %c0_i32_0 : i32, i32
  }
  func.func @transform_2(%arg0: i32) -> (i32, i32) {
    %c0_i32 = arith.constant 0 : i32
    %c0_i32_0 = arith.constant 0 : i32
    %c0_i32_1 = arith.constant 0 : i32
    return %c0_i32, %c0_i32_0 : i32, i32
  }
  func.func @transform_3(%arg0: i32) -> (i32, i32) {
    %c0_i32 = arith.constant 0 : i32
    %c0_i32_0 = arith.constant 0 : i32
    return %c0_i32, %arg0 : i32, i32
  }
}

</mosaic_0001>

<llo_original>
// kernel: categorical_log_probs_t.1
$region0: #{categorical_log_probs_t.1}
  #allocation0 [shape = 'u32[]', space=smem, size = 0x4, offset = 0x4, fixed_abs, tag = 'smem constant byte address 0x4 - core index']
  #allocation1 [shape = 'u32[72,128]{1,0:T(1,128)}', space=vmem, size = 0x9000, scoped, tag = 'internal scratch']
  %s0 = inlined_call_operand.vmem [shape: f32[500,32], index: 0, kind: input, shape index: {}]
  %s1 = inlined_call_operand.vmem [shape: f32[32,16], index: 1, kind: input, shape index: {}]
  %s2 = inlined_call_operand.vmem [shape: f32[1,16], index: 2, kind: input, shape index: {}]
  %s3 = inlined_call_operand.hbm [shape: f32[16,500], index: 3, kind: output, shape index: {}]
  %s4 = sld [smem:[#allocation0]]
  $region45: #{categorical_log_probs_t.1} parent=0
    _
  %s6 = ssub.s32 1, %s4
  %s7 = scalar_select 0, %s6, %s4
  $region1: #{categorical_log_probs_t.1} parent=0
    #allocation2 [shape = 'u8[32768]{0}', space=vmem, size = 0x8000, scoped, tag = 'output window, operand 0']
    #allocation3 [shape = 's32[2]{0}', space=sflag, size = 0x8, scoped, tag = 'scoped memory for categorical_log_probs_t.1']
    %8 = vsyncpa [#allocation3], 0
    %s9 = scalar_lea.sflag [#allocation3], 1
    %10 = vsyncpa %s9, 0
    loop: start=0, step=1, limit=4
    $region2: #{categorical_log_probs_t.1} parent=1 // loop_pre_header
      _
    $region3: #{categorical_log_probs_t.1} parent=1 // loop_header
      %s12 = sphi 0, %s16
      %p13 = scmp.ge.s32.totalorder %s12, 4
      %s22 = sphi 0, %s24
      %s25 = sphi 0, %s22
      %s26 = sphi 0, %s25
      %s42 = sphi 0, %s26
      %s46 = sphi 0, %s46
      %s48 = sphi 0, %s46
      %s49 = sphi 0, %s48
      %s63 = sphi 0, %s49
      %s67 = sphi 0, %s67
      %s69 = sphi 0, %s67
      %s70 = sphi 0, %s69
      %s84 = sphi 0, %s70
      %s90 = sphi 0, %s92
      %s93 = sphi 0, %s90
      %s94 = sphi 0, %s93
      %s110 = sphi 0, %s94
    $region4: #{categorical_log_probs_t.1} parent=1 // loop_header_branch
      %15 = sbr.rel (%p13) target = $region8
    $region5: #{categorical_log_probs_t.1} parent=1 // loop_body
      %s17 = ssub.s32 %s12, 1
      %s18 = ssub.s32 %s12, 2
      %s19 = sadd.s32 %s12, 1
      %s20 = ssub.s32 %s12, %s19
      %p21 = scmp.eq.s32.totalorder %s20, 0
      %s23 = sadd.s32 %s22, 1
      %s24 = scalar_select %p21, %s22, %s23
      %p27 = pneg %p21
      %p28 = scmp.eq.s32.totalorder %s12, 1
      %p29 = por %p27, %p28
      %p30 = scmp.ne.s32.totalorder %s22, %s25
      %p31 = scmp.eq.s32.totalorder %s12, 0
      %p32 = por %p30, %p31
      %p33 = scmp.ne.s32.totalorder %s22, %s25
      %p34 = scmp.eq.s32.totalorder %s17, 1
      %p35 = por %p33, %p34
      %p36 = scmp.ne.s32.totalorder %s25, %s26
      %p37 = scmp.eq.s32.totalorder %s17, 0
      %p38 = por %p36, %p37
      %p39 = scmp.ne.s32.totalorder %s25, %s26
      %p40 = scmp.eq.s32.totalorder %s18, 1
      %p41 = por %p39, %p40
      %p43 = scmp.ne.s32.totalorder %s26, %s42
      %p44 = scmp.eq.s32.totalorder %s18, 0
      %p45 = por %p43, %p44
      %s47 = sadd.s32 %s46, 1
      %p50 = scmp.eq.s32.totalorder %s12, 1
      %p51 = scmp.ne.s32.totalorder %s46, %s48
      %p52 = scmp.eq.s32.totalorder %s12, 0
      %p53 = por %p51, %p52
      %p54 = scmp.ne.s32.totalorder %s46, %s48
      %p55 = scmp.eq.s32.totalorder %s17, 1
      %p56 = por %p54, %p55
      %p57 = scmp.ne.s32.totalorder %s48, %s49
      %p58 = scmp.eq.s32.totalorder %s17, 0
      %p59 = por %p57, %p58
      %p60 = scmp.ne.s32.totalorder %s48, %s49
      %p61 = scmp.eq.s32.totalorder %s18, 1
      %p62 = por %p60, %p61
      %p64 = scmp.ne.s32.totalorder %s49, %s63
      %p65 = scmp.eq.s32.totalorder %s18, 0
      %p66 = por %p64, %p65
      %s68 = sadd.s32 %s67, 1
      %p71 = scmp.eq.s32.totalorder %s12, 1
      %p72 = scmp.ne.s32.totalorder %s67, %s69
      %p73 = scmp.eq.s32.totalorder %s12, 0
      %p74 = por %p72, %p73
      %p75 = scmp.ne.s32.totalorder %s67, %s69
      %p76 = scmp.eq.s32.totalorder %s17, 1
      %p77 = por %p75, %p76
      %p78 = scmp.ne.s32.totalorder %s69, %s70
      %p79 = scmp.eq.s32.totalorder %s17, 0
      %p80 = por %p78, %p79
      %p81 = scmp.ne.s32.totalorder %s69, %s70
      %p82 = scmp.eq.s32.totalorder %s18, 1
      %p83 = por %p81, %p82
      %p85 = scmp.ne.s32.totalorder %s70, %s84
      %p86 = scmp.eq.s32.totalorder %s18, 0
      %p87 = por %p85, %p86
      %s88 = ssub.s32 %s12, %s19
      %p89 = scmp.eq.s32.totalorder %s88, 0
      %s91 = sadd.s32 %s90, 1
      %s92 = scalar_select %p89, %s90, %s91
      %p95 = pneg %p89
      %p96 = scmp.eq.s32.totalorder %s12, 1
      %p97 = por %p95, %p96
      %p98 = scmp.ne.s32.totalorder %s90, %s93
      %p99 = scmp.eq.s32.totalorder %s12, 0
      %p100 = por %p98, %p99
      %p101 = scmp.ne.s32.totalorder %s90, %s93
      %p102 = scmp.eq.s32.totalorder %s17, 1
      %p103 = por %p101, %p102
      %p104 = scmp.ne.s32.totalorder %s93, %s94
      %p105 = scmp.eq.s32.totalorder %s17, 0
      %p106 = por %p104, %p105
      %p107 = scmp.ne.s32.totalorder %s93, %s94
      %p108 = scmp.eq.s32.totalorder %s18, 1
      %p109 = por %p107, %p108
      %p111 = scmp.ne.s32.totalorder %s94, %s110
      %p112 = scmp.eq.s32.totalorder %s18, 0
      %p113 = por %p111, %p112
      %p114 = scmp.le.s32.totalorder 1, %s12
      %p115 = scmp.lt.s32.totalorder %s12, 3
      %p116 = pnand %p114, %p115
      %p117 = pneg %p116
      // Predicated region
      $region9: #{categorical_log_probs_t.1} parent=5 // pred_check
        _
      $region10: #{categorical_log_probs_t.1} parent=5 // pred_check_branch
        %119 = sbr.rel (%p116) target = $region12
      $region11: #{categorical_log_probs_t.1} parent=5 // pred_region
        %s120 = ssub.s32 %s12, 1
        // Predicated region
        $region13: #{categorical_log_probs_t.1} parent=11 // pred_check
          %p121 = pneg %p59
        $region14: #{categorical_log_probs_t.1} parent=11 // pred_check_branch
          %123 = sbr.rel (%p121) target = $region16
        $region15: #{categorical_log_probs_t.1} parent=11 // pred_region
          _
        $region16: #{categorical_log_probs_t.1} parent=11 // pred_fallthru
          _
        // Predicated region
        $region17: #{categorical_log_probs_t.1} parent=11 // pred_check
          %p124 = pneg %p80
        $region18: #{categorical_log_probs_t.1} parent=11 // pred_check_branch
          %126 = sbr.rel (%p124) target = $region20
        $region19: #{categorical_log_probs_t.1} parent=11 // pred_region
          _
        $region20: #{categorical_log_probs_t.1} parent=11 // pred_fallthru
          _
      $region12: #{categorical_log_probs_t.1} parent=5 // pred_fallthru
        _
      %p127 = scmp.lt.s32.totalorder %s12, 2
      // Predicated region
      $region21: #{categorical_log_probs_t.1} parent=5 // pred_check
        %p128 = pneg %p127
      $region22: #{categorical_log_probs_t.1} parent=5 // pred_check_branch
        %130 = sbr.rel (%p128) target = $region24
      $region23: #{categorical_log_probs_t.1} parent=5 // pred_region
        // Predicated region
        $region25: #{categorical_log_probs_t.1} parent=23 // pred_check
          %p131 = pneg %p32
        $region26: #{categorical_log_probs_t.1} parent=23 // pred_check_branch
          %133 = sbr.rel (%p131) target = $region28
        $region27: #{categorical_log_probs_t.1} parent=23 // pred_region
          %s134 = smul.u32 32, %s12
          %s135 = ssub.s32 63, %s134
          %p136 = scmp.lt.s32.totalorder %s135, 32
          %s137 = scalar_select %p136, %s135, 32
          %s138 = smul.u32 8, %s137
          %p139 = scmp.lt.s32.totalorder %s134, 62
          %s140 = scalar_select %p139, %s134, 62
          %s141 = smul.addr %s140, 8
          %s142 = scalar_lea.vmem %s0, %s141
          %s143 = smul.u32 32, %s12
          %s144 = ssub.s32 63, %s143
          %p145 = scmp.lt.s32.totalorder %s144, 32
          %s146 = scalar_select %p145, %s144, 32
          %s147 = smul.u32 8, %s146
        $region28: #{categorical_log_probs_t.1} parent=23 // pred_fallthru
          _
      $region24: #{categorical_log_probs_t.1} parent=5 // pred_fallthru
        _
      %p148 = scmp.le.s32.totalorder 1, %s12
      %p149 = scmp.lt.s32.totalorder %s12, 3
      %p150 = pnand %p148, %p149
      %p151 = pneg %p150
      // Predicated region
      $region29: #{categorical_log_probs_t.1} parent=5 // pred_check
        _
      $region30: #{categorical_log_probs_t.1} parent=5 // pred_check_branch
        %153 = sbr.rel (%p150) target = $region32
      $region31: #{categorical_log_probs_t.1} parent=5 // pred_region
        %s154 = ssub.s32 %s12, 1
        %s155 = smul.u32 32, %s17
        %s156 = ssub.s32 63, %s155
        %p157 = scmp.lt.s32.totalorder %s156, 32
        %s158 = scalar_select %p157, %s156, 32
        %s159 = smul.u32 8, %s158
        %p160 = scmp.lt.s32.totalorder %s155, 62
        %s161 = scalar_select %p160, %s155, 62
        %s162 = smul.addr %s161, 8
        %s163 = scalar_lea.vmem %s0, %s162
        %p164 = pneg %p38
        %p165 = pneg %p35
        %p166 = pneg %p59
        %p167 = pneg %p56
        %p168 = pneg %p80
        %p169 = pneg %p77
        %p170 = pneg %p106
        %p171 = pneg %p103
        %s172 = sand.u32 %s93, 1
        %s173 = scalar_lea.sflag [#allocation3], %s172
        %s174 = sand.u32 %s93, 1
        %s175 = smul.addr %s174, 32
        %s176 = scalar_lea.vmem [#allocation2], %s175
        %s177 = smul.u32 32, %s17
        %s178 = ssub.s32 63, %s177
        %p179 = scmp.lt.s32.totalorder %s178, 32
        %s180 = scalar_select %p179, %s178, 32
        %s181 = smul.u32 8, %s180
        %p182 = scmp.lt.s32.totalorder %s177, 62
        %s183 = scalar_select %p182, %s177, 62
        %s184 = smul.addr %s183, 8
        %s185 = scalar_lea.vmem %s0, %s184
        %s186 = smul.u32 32, %s17
        %s187 = ssub.s32 63, %s186
        %p188 = scmp.lt.s32.totalorder %s187, 32
        %s189 = scalar_select %p188, %s187, 32
        %s190 = smul.u32 8, %s189
        %s191 = smul.u32 2, %s17
        %v192 = vld [vmem:[%s185] sm:$0xff]
        %v193 = vld [vmem:[%s185 + $0x8] sm:$0xff]
        %v194 = vld [vmem:[%s185 + $0x10] sm:$0xff]
        %v195 = vld [vmem:[%s185 + $0x18] sm:$0xff]
        %v196 = vld [vmem:[%s185 + $0x20] sm:$0xff]
        %v197 = vld [vmem:[%s185 + $0x28] sm:$0xff]
        %v198 = vld [vmem:[%s185 + $0x30] sm:$0xff]
        %v199 = vld [vmem:[%s185 + $0x38] sm:$0xff]
        %v200 = vld [vmem:[%s185 + $0x40] sm:$0xff]
        %v201 = vld [vmem:[%s185 + $0x48] sm:$0xff]
        %v202 = vld [vmem:[%s185 + $0x50] sm:$0xff]
        %v203 = vld [vmem:[%s185 + $0x58] sm:$0xff]
        %v204 = vld [vmem:[%s185 + $0x60] sm:$0xff]
        %v205 = vld [vmem:[%s185 + $0x68] sm:$0xff]
        %v206 = vld [vmem:[%s185 + $0x70] sm:$0xff]
        %v207 = vld [vmem:[%s185 + $0x78] sm:$0xff]
        %v208 = vld [vmem:[%s185 + $0x80] sm:$0xff]
        %v209 = vld [vmem:[%s185 + $0x88] sm:$0xff]
        %v210 = vld [vmem:[%s185 + $0x90] sm:$0xff]
        %v211 = vld [vmem:[%s185 + $0x98] sm:$0xff]
        %v212 = vld [vmem:[%s185 + $0xa0] sm:$0xff]
        %v213 = vld [vmem:[%s185 + $0xa8] sm:$0xff]
        %v214 = vld [vmem:[%s185 + $0xb0] sm:$0xff]
        %v215 = vld [vmem:[%s185 + $0xb8] sm:$0xff]
        %v216 = vld [vmem:[%s185 + $0xc0] sm:$0xff]
        %v217 = vld [vmem:[%s185 + $0xc8] sm:$0xff]
        %v218 = vld [vmem:[%s185 + $0xd0] sm:$0xff]
        %v219 = vld [vmem:[%s185 + $0xd8] sm:$0xff]
        %v220 = vld [vmem:[%s185 + $0xe0] sm:$0xff]
        %v221 = vld [vmem:[%s185 + $0xe8] sm:$0xff]
        %v222 = vld [vmem:[%s185 + $0xf0] sm:$0xff]
        %v223 = vld [vmem:[%s185 + $0xf8] sm:$0xff]
        %v224 = vld [vmem:[%s1] sm:$0xff]
        %v225 = vld [vmem:[%s1 + $0x8] sm:$0xff]
        %v226 = vld [vmem:[%s1 + $0x10] sm:$0xff]
        %v227 = vld [vmem:[%s1 + $0x18] sm:$0xff]
        %v228 = vld [vmem:[%s2] sm:$0x1]
        %v230 = vperm.slane %v228, 0
        %vm232 = vcmask 261120
        %v234 = vsel %vm232, %v192, 0
        %v237 = vsel %vm232, %v193, 0
        %v240 = vsel %vm232, %v194, 0
        %v243 = vsel %vm232, %v195, 0
        %v246 = vsel %vm232, %v196, 0
        %v249 = vsel %vm232, %v197, 0
        %v252 = vsel %vm232, %v198, 0
        %v255 = vsel %vm232, %v199, 0
        %v258 = vsel %vm232, %v200, 0
        %v261 = vsel %vm232, %v201, 0
        %v264 = vsel %vm232, %v202, 0
        %v267 = vsel %vm232, %v203, 0
        %v270 = vsel %vm232, %v204, 0
        %v273 = vsel %vm232, %v205, 0
        %v276 = vsel %vm232, %v206, 0
        %v279 = vsel %vm232, %v207, 0
        %v282 = vsel %vm232, %v208, 0
        %v285 = vsel %vm232, %v209, 0
        %v288 = vsel %vm232, %v210, 0
        %v291 = vsel %vm232, %v211, 0
        %v294 = vsel %vm232, %v212, 0
        %v297 = vsel %vm232, %v213, 0
        %v300 = vsel %vm232, %v214, 0
        %v303 = vsel %vm232, %v215, 0
        %v306 = vsel %vm232, %v216, 0
        %v309 = vsel %vm232, %v217, 0
        %v312 = vsel %vm232, %v218, 0
        %v315 = vsel %vm232, %v219, 0
        %v318 = vsel %vm232, %v220, 0
        %v321 = vsel %vm232, %v221, 0
        %v324 = vsel %vm232, %v222, 0
        %v327 = vsel %vm232, %v223, 0
        %329 = vmatpush.msra.mxu0 0.0
        %330 = vmatpush.msra.mxu0 0.0
        %331 = vmatpush.msra.mxu0 0.0
        %332 = vmatpush.msra.mxu0 0.0
        %333 = vmatpush.msra.mxu0 0.0
        %334 = vmatpush.msra.mxu0 0.0
        %335 = vmatpush.msra.mxu0 0.0
        %336 = vmatpush.msra.mxu0 0.0
        %337 = vmatpush.msra.mxu0 0.0
        %338 = vmatpush.msra.mxu0 0.0
        %339 = vmatpush.msra.mxu0 0.0
        %340 = vmatpush.msra.mxu0 0.0
        %341 = vmatpush.msra.mxu0 %v227
        %342 = vmatpush.msra.mxu0 %v226
        %343 = vmatpush.msra.mxu0 %v225
        %344 = vmatpush.msra.mxu0 %v224
        %345 = vmatmul.f32.gmra.mxu0 %v234
        %v346 = vpop.f32.mrf.mxu0
        %v347 = vadd.f32 %v230, %v346
        %348 = vmatmul.f32.gmra.mxu0 %v237
        %v349 = vpop.f32.mrf.mxu0
        %v350 = vadd.f32 %v230, %v349
        %351 = vmatmul.f32.gmra.mxu0 %v240
        %v352 = vpop.f32.mrf.mxu0
        %v353 = vadd.f32 %v230, %v352
        %354 = vmatmul.f32.gmra.mxu0 %v243
        %v355 = vpop.f32.mrf.mxu0
        %v356 = vadd.f32 %v230, %v355
        %357 = vmatmul.f32.gmra.mxu0 %v246
        %v358 = vpop.f32.mrf.mxu0
        %v359 = vadd.f32 %v230, %v358
        %360 = vmatmul.f32.gmra.mxu0 %v249
        %v361 = vpop.f32.mrf.mxu0
        %v362 = vadd.f32 %v230, %v361
        %363 = vmatmul.f32.gmra.mxu0 %v252
        %v364 = vpop.f32.mrf.mxu0
        %v365 = vadd.f32 %v230, %v364
        %366 = vmatmul.f32.gmra.mxu0 %v255
        %v367 = vpop.f32.mrf.mxu0
        %v368 = vadd.f32 %v230, %v367
        %369 = vmatmul.f32.gmra.mxu0 %v258
        %v370 = vpop.f32.mrf.mxu0
        %v371 = vadd.f32 %v230, %v370
        %372 = vmatmul.f32.gmra.mxu0 %v261
        %v373 = vpop.f32.mrf.mxu0
        %v374 = vadd.f32 %v230, %v373
        %375 = vmatmul.f32.gmra.mxu0 %v264
        %v376 = vpop.f32.mrf.mxu0
        %v377 = vadd.f32 %v230, %v376
        %378 = vmatmul.f32.gmra.mxu0 %v267
        %v379 = vpop.f32.mrf.mxu0
        %v380 = vadd.f32 %v230, %v379
        %381 = vmatmul.f32.gmra.mxu0 %v270
        %v382 = vpop.f32.mrf.mxu0
        %v383 = vadd.f32 %v230, %v382
        %384 = vmatmul.f32.gmra.mxu0 %v273
        %v385 = vpop.f32.mrf.mxu0
        %v386 = vadd.f32 %v230, %v385
        %387 = vmatmul.f32.gmra.mxu0 %v276
        %v388 = vpop.f32.mrf.mxu0
        %v389 = vadd.f32 %v230, %v388
        %390 = vmatmul.f32.gmra.mxu0 %v279
        %v391 = vpop.f32.mrf.mxu0
        %v392 = vadd.f32 %v230, %v391
        %393 = vmatmul.f32.gmra.mxu0 %v282
        %v394 = vpop.f32.mrf.mxu0
        %v395 = vadd.f32 %v230, %v394
        %396 = vmatmul.f32.gmra.mxu0 %v285
        %v397 = vpop.f32.mrf.mxu0
        %v398 = vadd.f32 %v230, %v397
        %399 = vmatmul.f32.gmra.mxu0 %v288
        %v400 = vpop.f32.mrf.mxu0
        %v401 = vadd.f32 %v230, %v400
        %402 = vmatmul.f32.gmra.mxu0 %v291
        %v403 = vpop.f32.mrf.mxu0
        %v404 = vadd.f32 %v230, %v403
        %405 = vmatmul.f32.gmra.mxu0 %v294
        %v406 = vpop.f32.mrf.mxu0
        %v407 = vadd.f32 %v230, %v406
        %408 = vmatmul.f32.gmra.mxu0 %v297
        %v409 = vpop.f32.mrf.mxu0
        %v410 = vadd.f32 %v230, %v409
        %411 = vmatmul.f32.gmra.mxu0 %v300
        %v412 = vpop.f32.mrf.mxu0
        %v413 = vadd.f32 %v230, %v412
        %414 = vmatmul.f32.gmra.mxu0 %v303
        %v415 = vpop.f32.mrf.mxu0
        %v416 = vadd.f32 %v230, %v415
        %417 = vmatmul.f32.gmra.mxu0 %v306
        %v418 = vpop.f32.mrf.mxu0
        %v419 = vadd.f32 %v230, %v418
        %420 = vmatmul.f32.gmra.mxu0 %v309
        %v421 = vpop.f32.mrf.mxu0
        %v422 = vadd.f32 %v230, %v421
        %423 = vmatmul.f32.gmra.mxu0 %v312
        %v424 = vpop.f32.mrf.mxu0
        %v425 = vadd.f32 %v230, %v424
        %426 = vmatmul.f32.gmra.mxu0 %v315
        %v427 = vpop.f32.mrf.mxu0
        %v428 = vadd.f32 %v230, %v427
        %429 = vmatmul.f32.gmra.mxu0 %v318
        %v430 = vpop.f32.mrf.mxu0
        %v431 = vadd.f32 %v230, %v430
        %432 = vmatmul.f32.gmra.mxu0 %v321
        %v433 = vpop.f32.mrf.mxu0
        %v434 = vadd.f32 %v230, %v433
        %435 = vmatmul.f32.gmra.mxu0 %v324
        %v436 = vpop.f32.mrf.mxu0
        %v437 = vadd.f32 %v230, %v436
        %438 = vmatmul.f32.gmra.mxu0 %v327
        %v439 = vpop.f32.mrf.mxu0
        %v440 = vadd.f32 %v230, %v439
        %441 = vdwg.mxu0
        %vm442 = vcmask 130048
        %v443 = vsel %vm442, %v347, -inf
        %444 = vmax.xlane.f32.xlu0 %v443
        %v445 = vpop.xlane.xlu0 %444
        %v446 = vsel %vm442, %v350, -inf
        %447 = vmax.xlane.f32.xlu0 %v446
        %v448 = vpop.xlane.xlu0 %447
        %v449 = vsel %vm442, %v353, -inf
        %450 = vmax.xlane.f32.xlu0 %v449
        %v451 = vpop.xlane.xlu0 %450
        %v452 = vsel %vm442, %v356, -inf
        %453 = vmax.xlane.f32.xlu0 %v452
        %v454 = vpop.xlane.xlu0 %453
        %v455 = vsel %vm442, %v359, -inf
        %456 = vmax.xlane.f32.xlu0 %v455
        %v457 = vpop.xlane.xlu0 %456
        %v458 = vsel %vm442, %v362, -inf
        %459 = vmax.xlane.f32.xlu0 %v458
        %v460 = vpop.xlane.xlu0 %459
        %v461 = vsel %vm442, %v365, -inf
        %462 = vmax.xlane.f32.xlu0 %v461
        %v463 = vpop.xlane.xlu0 %462
        %v464 = vsel %vm442, %v368, -inf
        %465 = vmax.xlane.f32.xlu0 %v464
        %v466 = vpop.xlane.xlu0 %465
        %v467 = vsel %vm442, %v371, -inf
        %468 = vmax.xlane.f32.xlu0 %v467
        %v469 = vpop.xlane.xlu0 %468
        %v470 = vsel %vm442, %v374, -inf
        %471 = vmax.xlane.f32.xlu0 %v470
        %v472 = vpop.xlane.xlu0 %471
        %v473 = vsel %vm442, %v377, -inf
        %474 = vmax.xlane.f32.xlu0 %v473
        %v475 = vpop.xlane.xlu0 %474
        %v476 = vsel %vm442, %v380, -inf
        %477 = vmax.xlane.f32.xlu0 %v476
        %v478 = vpop.xlane.xlu0 %477
        %v479 = vsel %vm442, %v383, -inf
        %480 = vmax.xlane.f32.xlu0 %v479
        %v481 = vpop.xlane.xlu0 %480
        %v482 = vsel %vm442, %v386, -inf
        %483 = vmax.xlane.f32.xlu0 %v482
        %v484 = vpop.xlane.xlu0 %483
        %v485 = vsel %vm442, %v389, -inf
        %486 = vmax.xlane.f32.xlu0 %v485
        %v487 = vpop.xlane.xlu0 %486
        %v488 = vsel %vm442, %v392, -inf
        %489 = vmax.xlane.f32.xlu0 %v488
        %v490 = vpop.xlane.xlu0 %489
        %v491 = vsel %vm442, %v395, -inf
        %492 = vmax.xlane.f32.xlu0 %v491
        %v493 = vpop.xlane.xlu0 %492
        %v494 = vsel %vm442, %v398, -inf
        %495 = vmax.xlane.f32.xlu0 %v494
        %v496 = vpop.xlane.xlu0 %495
        %v497 = vsel %vm442, %v401, -inf
        %498 = vmax.xlane.f32.xlu0 %v497
        %v499 = vpop.xlane.xlu0 %498
        %v500 = vsel %vm442, %v404, -inf
        %501 = vmax.xlane.f32.xlu0 %v500
        %v502 = vpop.xlane.xlu0 %501
        %v503 = vsel %vm442, %v407, -inf
        %504 = vmax.xlane.f32.xlu0 %v503
        %v505 = vpop.xlane.xlu0 %504
        %v506 = vsel %vm442, %v410, -inf
        %507 = vmax.xlane.f32.xlu0 %v506
        %v508 = vpop.xlane.xlu0 %507
        %v509 = vsel %vm442, %v413, -inf
        %510 = vmax.xlane.f32.xlu0 %v509
        %v511 = vpop.xlane.xlu0 %510
        %v512 = vsel %vm442, %v416, -inf
        %513 = vmax.xlane.f32.xlu0 %v512
        %v514 = vpop.xlane.xlu0 %513
        %v515 = vsel %vm442, %v419, -inf
        %516 = vmax.xlane.f32.xlu0 %v515
        %v517 = vpop.xlane.xlu0 %516
        %v518 = vsel %vm442, %v422, -inf
        %519 = vmax.xlane.f32.xlu0 %v518
        %v520 = vpop.xlane.xlu0 %519
        %v521 = vsel %vm442, %v425, -inf
        %522 = vmax.xlane.f32.xlu0 %v521
        %v523 = vpop.xlane.xlu0 %522
        %v524 = vsel %vm442, %v428, -inf
        %525 = vmax.xlane.f32.xlu0 %v524
        %v526 = vpop.xlane.xlu0 %525
        %v527 = vsel %vm442, %v431, -inf
        %528 = vmax.xlane.f32.xlu0 %v527
        %v529 = vpop.xlane.xlu0 %528
        %v530 = vsel %vm442, %v434, -inf
        %531 = vmax.xlane.f32.xlu0 %v530
        %v532 = vpop.xlane.xlu0 %531
        %v533 = vsel %vm442, %v437, -inf
        %534 = vmax.xlane.f32.xlu0 %v533
        %v535 = vpop.xlane.xlu0 %534
        %v536 = vsel %vm442, %v440, -inf
        %537 = vmax.xlane.f32.xlu0 %v536
        %v538 = vpop.xlane.xlu0 %537
        %v539 = vsub.f32 %v347, %v445
        %v540 = vsub.f32 %v350, %v448
        %v541 = vsub.f32 %v353, %v451
        %v542 = vsub.f32 %v356, %v454
        %v543 = vsub.f32 %v359, %v457
        %v544 = vsub.f32 %v362, %v460
        %v545 = vsub.f32 %v365, %v463
        %v546 = vsub.f32 %v368, %v466
        %v547 = vsub.f32 %v371, %v469
        %v548 = vsub.f32 %v374, %v472
        %v549 = vsub.f32 %v377, %v475
        %v550 = vsub.f32 %v380, %v478
        %v551 = vsub.f32 %v383, %v481
        %v552 = vsub.f32 %v386, %v484
        %v553 = vsub.f32 %v389, %v487
        %v554 = vsub.f32 %v392, %v490
        %v555 = vsub.f32 %v395, %v493
        %v556 = vsub.f32 %v398, %v496
        %v557 = vsub.f32 %v401, %v499
        %v558 = vsub.f32 %v404, %v502
        %v559 = vsub.f32 %v407, %v505
        %v560 = vsub.f32 %v410, %v508
        %v561 = vsub.f32 %v413, %v511
        %v562 = vsub.f32 %v416, %v514
        %v563 = vsub.f32 %v419, %v517
        %v564 = vsub.f32 %v422, %v520
        %v565 = vsub.f32 %v425, %v523
        %v566 = vsub.f32 %v428, %v526
        %v567 = vsub.f32 %v431, %v529
        %v568 = vsub.f32 %v434, %v532
        %v569 = vsub.f32 %v437, %v535
        %v570 = vsub.f32 %v440, %v538
        %v571 = vmul.f32 %v539, 1.442695
        %v572 = vpow.pop %v571
        %v573 = vmul.f32 %v540, 1.442695
        %v574 = vpow.pop %v573
        %v575 = vmul.f32 %v541, 1.442695
        %v576 = vpow.pop %v575
        %v577 = vmul.f32 %v542, 1.442695
        %v578 = vpow.pop %v577
        %v579 = vmul.f32 %v543, 1.442695
        %v580 = vpow.pop %v579
        %v581 = vmul.f32 %v544, 1.442695
        %v582 = vpow.pop %v581
        %v583 = vmul.f32 %v545, 1.442695
        %v584 = vpow.pop %v583
        %v585 = vmul.f32 %v546, 1.442695
        %v586 = vpow.pop %v585
        %v587 = vmul.f32 %v547, 1.442695
        %v588 = vpow.pop %v587
        %v589 = vmul.f32 %v548, 1.442695
        %v590 = vpow.pop %v589
        %v591 = vmul.f32 %v549, 1.442695
        %v592 = vpow.pop %v591
        %v593 = vmul.f32 %v550, 1.442695
        %v594 = vpow.pop %v593
        %v595 = vmul.f32 %v551, 1.442695
        %v596 = vpow.pop %v595
        %v597 = vmul.f32 %v552, 1.442695
        %v598 = vpow.pop %v597
        %v599 = vmul.f32 %v553, 1.442695
        %v600 = vpow.pop %v599
        %v601 = vmul.f32 %v554, 1.442695
        %v602 = vpow.pop %v601
        %v603 = vmul.f32 %v555, 1.442695
        %v604 = vpow.pop %v603
        %v605 = vmul.f32 %v556, 1.442695
        %v606 = vpow.pop %v605
        %v607 = vmul.f32 %v557, 1.442695
        %v608 = vpow.pop %v607
        %v609 = vmul.f32 %v558, 1.442695
        %v610 = vpow.pop %v609
        %v611 = vmul.f32 %v559, 1.442695
        %v612 = vpow.pop %v611
        %v613 = vmul.f32 %v560, 1.442695
        %v614 = vpow.pop %v613
        %v615 = vmul.f32 %v561, 1.442695
        %v616 = vpow.pop %v615
        %v617 = vmul.f32 %v562, 1.442695
        %v618 = vpow.pop %v617
        %v619 = vmul.f32 %v563, 1.442695
        %v620 = vpow.pop %v619
        %v621 = vmul.f32 %v564, 1.442695
        %v622 = vpow.pop %v621
        %v623 = vmul.f32 %v565, 1.442695
        %v624 = vpow.pop %v623
        %v625 = vmul.f32 %v566, 1.442695
        %v626 = vpow.pop %v625
        %v627 = vmul.f32 %v567, 1.442695
        %v628 = vpow.pop %v627
        %v629 = vmul.f32 %v568, 1.442695
        %v630 = vpow.pop %v629
        %v631 = vmul.f32 %v569, 1.442695
        %v632 = vpow.pop %v631
        %v633 = vmul.f32 %v570, 1.442695
        %v634 = vpow.pop %v633
        %v635 = vsel %vm442, %v572, 0.0
        %636 = vadd.xlane.f32.xlu0 %v635
        %v637 = vpop.xlane.xlu0 %636
        %v638 = vsel %vm442, %v574, 0.0
        %639 = vadd.xlane.f32.xlu0 %v638
        %v640 = vpop.xlane.xlu0 %639
        %v641 = vsel %vm442, %v576, 0.0
        %642 = vadd.xlane.f32.xlu0 %v641
        %v643 = vpop.xlane.xlu0 %642
        %v644 = vsel %vm442, %v578, 0.0
        %645 = vadd.xlane.f32.xlu0 %v644
        %v646 = vpop.xlane.xlu0 %645
        %v647 = vsel %vm442, %v580, 0.0
        %648 = vadd.xlane.f32.xlu0 %v647
        %v649 = vpop.xlane.xlu0 %648
        %v650 = vsel %vm442, %v582, 0.0
        %651 = vadd.xlane.f32.xlu0 %v650
        %v652 = vpop.xlane.xlu0 %651
        %v653 = vsel %vm442, %v584, 0.0
        %654 = vadd.xlane.f32.xlu0 %v653
        %v655 = vpop.xlane.xlu0 %654
        %v656 = vsel %vm442, %v586, 0.0
        %657 = vadd.xlane.f32.xlu0 %v656
        %v658 = vpop.xlane.xlu0 %657
        %v659 = vsel %vm442, %v588, 0.0
        %660 = vadd.xlane.f32.xlu0 %v659
        %v661 = vpop.xlane.xlu0 %660
        %v662 = vsel %vm442, %v590, 0.0
        %663 = vadd.xlane.f32.xlu0 %v662
        %v664 = vpop.xlane.xlu0 %663
        %v665 = vsel %vm442, %v592, 0.0
        %666 = vadd.xlane.f32.xlu0 %v665
        %v667 = vpop.xlane.xlu0 %666
        %v668 = vsel %vm442, %v594, 0.0
        %669 = vadd.xlane.f32.xlu0 %v668
        %v670 = vpop.xlane.xlu0 %669
        %v671 = vsel %vm442, %v596, 0.0
        %672 = vadd.xlane.f32.xlu0 %v671
        %v673 = vpop.xlane.xlu0 %672
        %v674 = vsel %vm442, %v598, 0.0
        %675 = vadd.xlane.f32.xlu0 %v674
        %v676 = vpop.xlane.xlu0 %675
        %v677 = vsel %vm442, %v600, 0.0
        %678 = vadd.xlane.f32.xlu0 %v677
        %v679 = vpop.xlane.xlu0 %678
        %v680 = vsel %vm442, %v602, 0.0
        %681 = vadd.xlane.f32.xlu0 %v680
        %v682 = vpop.xlane.xlu0 %681
        %v683 = vsel %vm442, %v604, 0.0
        %684 = vadd.xlane.f32.xlu0 %v683
        %v685 = vpop.xlane.xlu0 %684
        %v686 = vsel %vm442, %v606, 0.0
        %687 = vadd.xlane.f32.xlu0 %v686
        %v688 = vpop.xlane.xlu0 %687
        %v689 = vsel %vm442, %v608, 0.0
        %690 = vadd.xlane.f32.xlu0 %v689
        %v691 = vpop.xlane.xlu0 %690
        %v692 = vsel %vm442, %v610, 0.0
        %693 = vadd.xlane.f32.xlu0 %v692
        %v694 = vpop.xlane.xlu0 %693
        %v695 = vsel %vm442, %v612, 0.0
        %696 = vadd.xlane.f32.xlu0 %v695
        %v697 = vpop.xlane.xlu0 %696
        %v698 = vsel %vm442, %v614, 0.0
        %699 = vadd.xlane.f32.xlu0 %v698
        %v700 = vpop.xlane.xlu0 %699
        %v701 = vsel %vm442, %v616, 0.0
        %702 = vadd.xlane.f32.xlu0 %v701
        %v703 = vpop.xlane.xlu0 %702
        %v704 = vsel %vm442, %v618, 0.0
        %705 = vadd.xlane.f32.xlu0 %v704
        %v706 = vpop.xlane.xlu0 %705
        %v707 = vsel %vm442, %v620, 0.0
        %708 = vadd.xlane.f32.xlu0 %v707
        %v709 = vpop.xlane.xlu0 %708
        %v710 = vsel %vm442, %v622, 0.0
        %711 = vadd.xlane.f32.xlu0 %v710
        %v712 = vpop.xlane.xlu0 %711
        %v713 = vsel %vm442, %v624, 0.0
        %714 = vadd.xlane.f32.xlu0 %v713
        %v715 = vpop.xlane.xlu0 %714
        %v716 = vsel %vm442, %v626, 0.0
        %717 = vadd.xlane.f32.xlu0 %v716
        %v718 = vpop.xlane.xlu0 %717
        %v719 = vsel %vm442, %v628, 0.0
        %720 = vadd.xlane.f32.xlu0 %v719
        %v721 = vpop.xlane.xlu0 %720
        %v722 = vsel %vm442, %v630, 0.0
        %723 = vadd.xlane.f32.xlu0 %v722
        %v724 = vpop.xlane.xlu0 %723
        %v725 = vsel %vm442, %v632, 0.0
        %726 = vadd.xlane.f32.xlu0 %v725
        %v727 = vpop.xlane.xlu0 %726
        %v728 = vsel %vm442, %v634, 0.0
        %729 = vadd.xlane.f32.xlu0 %v728
        %v730 = vpop.xlane.xlu0 %729
        %v731 = vlog2.pop %v637
        %v732 = vmul.f32 %v731, 0.6931472
        %v733 = vlog2.pop %v640
        %v734 = vmul.f32 %v733, 0.6931472
        %v735 = vlog2.pop %v643
        %v736 = vmul.f32 %v735, 0.6931472
        %v737 = vlog2.pop %v646
        %v738 = vmul.f32 %v737, 0.6931472
        %v739 = vlog2.pop %v649
        %v740 = vmul.f32 %v739, 0.6931472
        %v741 = vlog2.pop %v652
        %v742 = vmul.f32 %v741, 0.6931472
        %v743 = vlog2.pop %v655
        %v744 = vmul.f32 %v743, 0.6931472
        %v745 = vlog2.pop %v658
        %v746 = vmul.f32 %v745, 0.6931472
        %v747 = vlog2.pop %v661
        %v748 = vmul.f32 %v747, 0.6931472
        %v749 = vlog2.pop %v664
        %v750 = vmul.f32 %v749, 0.6931472
        %v751 = vlog2.pop %v667
        %v752 = vmul.f32 %v751, 0.6931472
        %v753 = vlog2.pop %v670
        %v754 = vmul.f32 %v753, 0.6931472
        %v755 = vlog2.pop %v673
        %v756 = vmul.f32 %v755, 0.6931472
        %v757 = vlog2.pop %v676
        %v758 = vmul.f32 %v757, 0.6931472
        %v759 = vlog2.pop %v679
        %v760 = vmul.f32 %v759, 0.6931472
        %v761 = vlog2.pop %v682
        %v762 = vmul.f32 %v761, 0.6931472
        %v763 = vlog2.pop %v685
        %v764 = vmul.f32 %v763, 0.6931472
        %v765 = vlog2.pop %v688
        %v766 = vmul.f32 %v765, 0.6931472
        %v767 = vlog2.pop %v691
        %v768 = vmul.f32 %v767, 0.6931472
        %v769 = vlog2.pop %v694
        %v770 = vmul.f32 %v769, 0.6931472
        %v771 = vlog2.pop %v697
        %v772 = vmul.f32 %v771, 0.6931472
        %v773 = vlog2.pop %v700
        %v774 = vmul.f32 %v773, 0.6931472
        %v775 = vlog2.pop %v703
        %v776 = vmul.f32 %v775, 0.6931472
        %v777 = vlog2.pop %v706
        %v778 = vmul.f32 %v777, 0.6931472
        %v779 = vlog2.pop %v709
        %v780 = vmul.f32 %v779, 0.6931472
        %v781 = vlog2.pop %v712
        %v782 = vmul.f32 %v781, 0.6931472
        %v783 = vlog2.pop %v715
        %v784 = vmul.f32 %v783, 0.6931472
        %v785 = vlog2.pop %v718
        %v786 = vmul.f32 %v785, 0.6931472
        %v787 = vlog2.pop %v721
        %v788 = vmul.f32 %v787, 0.6931472
        %v789 = vlog2.pop %v724
        %v790 = vmul.f32 %v789, 0.6931472
        %v791 = vlog2.pop %v727
        %v792 = vmul.f32 %v791, 0.6931472
        %v793 = vlog2.pop %v730
        %v794 = vmul.f32 %v793, 0.6931472
        %v795 = vsub.f32 %v539, %v732
        %v796 = vsub.f32 %v540, %v734
        %v797 = vsub.f32 %v541, %v736
        %v798 = vsub.f32 %v542, %v738
        %v799 = vsub.f32 %v543, %v740
        %v800 = vsub.f32 %v544, %v742
        %v801 = vsub.f32 %v545, %v744
        %v802 = vsub.f32 %v546, %v746
        %v803 = vsub.f32 %v547, %v748
        %v804 = vsub.f32 %v548, %v750
        %v805 = vsub.f32 %v549, %v752
        %v806 = vsub.f32 %v550, %v754
        %v807 = vsub.f32 %v551, %v756
        %v808 = vsub.f32 %v552, %v758
        %v809 = vsub.f32 %v553, %v760
        %v810 = vsub.f32 %v554, %v762
        %v811 = vsub.f32 %v555, %v764
        %v812 = vsub.f32 %v556, %v766
        %v813 = vsub.f32 %v557, %v768
        %v814 = vsub.f32 %v558, %v770
        %v815 = vsub.f32 %v559, %v772
        %v816 = vsub.f32 %v560, %v774
        %v817 = vsub.f32 %v561, %v776
        %v818 = vsub.f32 %v562, %v778
        %v819 = vsub.f32 %v563, %v780
        %v820 = vsub.f32 %v564, %v782
        %v821 = vsub.f32 %v565, %v784
        %v822 = vsub.f32 %v566, %v786
        %v823 = vsub.f32 %v567, %v788
        %v824 = vsub.f32 %v568, %v790
        %v825 = vsub.f32 %v569, %v792
        %v826 = vsub.f32 %v570, %v794
        %827 = vxpose.xlu0.b32.start [1/16] %v795, 128
        %828 = vxpose.xlu0.b32.cont [2/16] %v796, 128
        %829 = vxpose.xlu0.b32.cont [3/16] %v797, 128
        %830 = vxpose.xlu0.b32.cont [4/16] %v798, 128
        %831 = vxpose.xlu0.b32.cont [5/16] %v799, 128
        %832 = vxpose.xlu0.b32.cont [6/16] %v800, 128
        %833 = vxpose.xlu0.b32.cont [7/16] %v801, 128
        %834 = vxpose.xlu0.b32.cont [8/16] %v802, 128
        %835 = vxpose.xlu0.b32.cont [9/16] %v803, 128
        %836 = vxpose.xlu0.b32.cont [10/16] %v804, 128
        %837 = vxpose.xlu0.b32.cont [11/16] %v805, 128
        %838 = vxpose.xlu0.b32.cont [12/16] %v806, 128
        %839 = vxpose.xlu0.b32.cont [13/16] %v807, 128
        %840 = vxpose.xlu0.b32.cont [14/16] %v808, 128
        %841 = vxpose.xlu0.b32.cont [15/16] %v809, 128
        %842 = vxpose.xlu0.b32.end [16/16] %v810, 128
        %v843 = vpop.trf.xlu0
        %v844 = vpop.trf.xlu0
        %v845 = vpop.trf.xlu0
        %v846 = vpop.trf.xlu0
        %v847 = vpop.trf.xlu0
        %v848 = vpop.trf.xlu0
        %v849 = vpop.trf.xlu0
        %v850 = vpop.trf.xlu0
        %v851 = vpop.trf.xlu0
        %v852 = vpop.trf.xlu0
        %v853 = vpop.trf.xlu0
        %v854 = vpop.trf.xlu0
        %v855 = vpop.trf.xlu0
        %v856 = vpop.trf.xlu0
        %v857 = vpop.trf.xlu0
        %v858 = vpop.trf.xlu0
        %859 = vxpose.xlu0.b32.start [1/16] %v811, 128
        %860 = vxpose.xlu0.b32.cont [2/16] %v812, 128
        %861 = vxpose.xlu0.b32.cont [3/16] %v813, 128
        %862 = vxpose.xlu0.b32.cont [4/16] %v814, 128
        %863 = vxpose.xlu0.b32.cont [5/16] %v815, 128
        %864 = vxpose.xlu0.b32.cont [6/16] %v816, 128
        %865 = vxpose.xlu0.b32.cont [7/16] %v817, 128
        %866 = vxpose.xlu0.b32.cont [8/16] %v818, 128
        %867 = vxpose.xlu0.b32.cont [9/16] %v819, 128
        %868 = vxpose.xlu0.b32.cont [10/16] %v820, 128
        %869 = vxpose.xlu0.b32.cont [11/16] %v821, 128
        %870 = vxpose.xlu0.b32.cont [12/16] %v822, 128
        %871 = vxpose.xlu0.b32.cont [13/16] %v823, 128
        %872 = vxpose.xlu0.b32.cont [14/16] %v824, 128
        %873 = vxpose.xlu0.b32.cont [15/16] %v825, 128
        %874 = vxpose.xlu0.b32.end [16/16] %v826, 128
        %v875 = vpop.trf.xlu0
        %v876 = vpop.trf.xlu0
        %v877 = vpop.trf.xlu0
        %v878 = vpop.trf.xlu0
        %v879 = vpop.trf.xlu0
        %v880 = vpop.trf.xlu0
        %v881 = vpop.trf.xlu0
        %v882 = vpop.trf.xlu0
        %v883 = vpop.trf.xlu0
        %v884 = vpop.trf.xlu0
        %v885 = vpop.trf.xlu0
        %v886 = vpop.trf.xlu0
        %v887 = vpop.trf.xlu0
        %v888 = vpop.trf.xlu0
        %v889 = vpop.trf.xlu0
        %v890 = vpop.trf.xlu0
        %891 = vst [vmem:[%s176] sm:$0xff] %v843
        %892 = vst [vmem:[%s176 + $0x8] sm:$0xff] %v875
        %893 = vst [vmem:[%s176 + $0x10] sm:$0xff] %v844
        %894 = vst [vmem:[%s176 + $0x18] sm:$0xff] %v876
        %s895 = sand.u32 %s93, 1
        %s896 = scalar_lea.sflag [#allocation3], %s895
        %s897 = sand.u32 %s93, 1
        %s898 = smul.addr %s897, 32
        %s899 = scalar_lea.vmem [#allocation2], %s898
        // Predicated region
        $region33: #{categorical_log_probs_t.1} parent=31 // pred_check
          %p900 = pneg %p103
        $region34: #{categorical_log_probs_t.1} parent=31 // pred_check_branch
          %902 = sbr.rel (%p900) target = $region36
        $region35: #{categorical_log_probs_t.1} parent=31 // pred_region
          %s903 = smul.u32 2, %s17
          %905 = vsyncadd %s896, 0
          %s906 = smul.addr %s903, 8
          %s907 = scalar_lea.hbm %s3, %s906
          %s908 = sshll.u32 %s899, 4
          %s909 = int_to_ptr.vmem [resolvable:$true] %s908
          %s910 = sshll.u32 %s907, 4
          %s911 = int_to_ptr.hbm [resolvable:$true] %s910
          %916 = dma.vmem_to_hbm [thread:$0]  %s909, 512, %s911, %s896, 256, 512, 16
        $region36: #{categorical_log_probs_t.1} parent=31 // pred_fallthru
          _
      $region32: #{categorical_log_probs_t.1} parent=5 // pred_fallthru
        _
      %p917 = scmp.le.s32.totalorder 2, %s12
      // Predicated region
      $region37: #{categorical_log_probs_t.1} parent=5 // pred_check
        %p918 = pneg %p917
      $region38: #{categorical_log_probs_t.1} parent=5 // pred_check_branch
        %920 = sbr.rel (%p918) target = $region40
      $region39: #{categorical_log_probs_t.1} parent=5 // pred_region
        %s921 = ssub.s32 %s12, 2
        // Predicated region
        $region41: #{categorical_log_probs_t.1} parent=39 // pred_check
          %p922 = pneg %p109
        $region42: #{categorical_log_probs_t.1} parent=39 // pred_check_branch
          %924 = sbr.rel (%p922) target = $region44
        $region43: #{categorical_log_probs_t.1} parent=39 // pred_region
          %s925 = sand.u32 %s94, 1
          %s926 = scalar_lea.sflag [#allocation3], %s925
          %s927 = sand.u32 %s94, 1
          %s928 = smul.addr %s927, 32
          %s929 = scalar_lea.vmem [#allocation2], %s928
          %931 = dma.done %s926, 512
        $region44: #{categorical_log_probs_t.1} parent=39 // pred_fallthru
          _
      $region40: #{categorical_log_probs_t.1} parent=5 // pred_fallthru
        _
    $region6: #{categorical_log_probs_t.1} parent=1 // loop_footer
      %s16 = sadd.s32 1, %s12
    $region7: #{categorical_log_probs_t.1} parent=1 // loop_footer_branch
      %11 = sbr.rel target = $region3
    $region8: #{categorical_log_probs_t.1} parent=1 // loop_exit
      _
    %932 = vsyncpa [#allocation3], 1
    %s933 = scalar_lea.sflag [#allocation3], 1
    %934 = vsyncpa %s933, 1

</llo_original>
